<compile_context>
chip_gen: v6e
topology: v6e:2x2x1
jax: 0.10.0
libtpu: 0.0.40
codegen_flags: <defaults>
</compile_context>

<pallas_src>
import functools

import jax
import jax.numpy as jnp
from jax.experimental import pallas as pl
from jax.experimental.pallas import tpu as pltpu


# ---------------------------------------------------------------------------
# Stage 1: per-layer streaming pooled sums (pure HBM-bandwidth bound).
# ---------------------------------------------------------------------------
def _pool_kernel(x_ref, out_ref, *, needs_mask, seq_packed, tile, n_seq_steps):
    s = pl.program_id(1)

    @pl.when(s == 0)
    def _init():
        out_ref[...] = jnp.zeros_like(out_ref)

    x = x_ref[...].astype(jnp.float32)                     # (B, tS, Fp)
    if needs_mask:
        # Non-divisor tile fallback: zero out packed-seq rows past the end.
        p = pl.program_id(0)
        start = (p * n_seq_steps + s) * tile
        seq_idx = jax.lax.broadcasted_iota(jnp.int32, x_ref.shape, 1)
        x = jnp.where(seq_idx < (seq_packed - start), x, 0.0)

    out_ref[...] = out_ref[...] + jnp.sum(x, axis=1)       # (B, Fp)


# ---------------------------------------------------------------------------
# Stage 2: fold partial sums and compute the contrastive loss (tiny).
# ---------------------------------------------------------------------------
def _finalize_kernel(*refs, n_layers, pack, margin, inv_s, inv_l):
    if pack > 1:
        part_ref, fold_ref, wpos_ref, wneg_ref, out_ref = refs
    else:
        part_ref, wpos_ref, wneg_ref, out_ref = refs
        fold_ref = None

    acc = jnp.sum(part_ref[...], axis=1)                   # (L, B, Fp): fold chunks
    wpos = wpos_ref[...]
    wneg = wneg_ref[...]

    total = jnp.zeros((), dtype=jnp.float32)
    for l in range(n_layers):
        if pack > 1:
            # Unpack the k lane groups and apply the 1/S mean in one tiny matmul.
            pooled = jax.lax.dot_general(acc[l], fold_ref[...],
                                         (((1,), (0,)), ((), ())),
                                         preferred_element_type=jnp.float32)
        else:
            pooled = acc[l] * inv_s                         # (B, F)

        # Pairwise squared Euclidean distances via the gram expansion (clamped
        # >= 0; the diagonal is masked out by the weights). For tiny B a VPU
        # broadcast-difference would be equivalent; the MXU path is kept so the
        # same code stays efficient for large B.
        gram = jax.lax.dot_general(pooled, pooled, (((1,), (1,)), ((), ())),
                                   preferred_element_type=jnp.float32)
        sq = jnp.sum(pooled * pooled, axis=1, keepdims=True)
        d2 = jnp.maximum(sq + jnp.transpose(sq) - 2.0 * gram, 0.0)
        d = jnp.sqrt(d2)
        hinge = jnp.maximum(margin - d, 0.0)
        # wpos / wneg already fold the off-diagonal mask and 1/(B^2 - B).
        total = total + jnp.sum(wpos * d2 + wneg * hinge * hinge)

    out_ref[...] = jnp.full(out_ref.shape, total * inv_l, dtype=out_ref.dtype)


# ---------------------------------------------------------------------------
# Tiling helpers (generation-aware).
# ---------------------------------------------------------------------------
def _vmem_capacity_bytes():
    try:
        return int(pltpu.get_tpu_info().vmem_capacity_bytes)
    except Exception:
        return 64 * 1024 * 1024        # conservative (v7x-sized) default


def _pick_seq_tile(batch, seq_packed, feat_packed, itemsize, budget_bytes):
    """Packed-sequence tile: whole axis if it fits the budget, otherwise the
    largest multiple-of-8 tile under budget, preferring exact divisors so no
    tail masking is needed. Never falls back to an over-budget whole block."""
    row_bytes = batch * feat_packed * itemsize
    if seq_packed * row_bytes <= budget_bytes or seq_packed <= 8:
        return seq_packed
    max_t = max(8, min((budget_bytes // row_bytes) // 8 * 8, seq_packed))
    for t in range(max_t, 7, -8):       # prefer a divisor (no masked tail)
        if seq_packed % t == 0:
            return t
    return max_t                        # guarded fallback: masked tail step


# ---------------------------------------------------------------------------
# Public wrapper.
# ---------------------------------------------------------------------------
def contrastive_safety_loss(feature_activations, safety_labels,
                            margin=1.0, temperature=0.1):
    """feature_activations: list of (B, S, F) arrays (same shape/dtype);
    safety_labels: (B,). Returns the scalar mean-over-layers contrastive loss."""
    del temperature  # unused in the reference forward pass
    # TODO(synk): layers with heterogeneous (S, F) would need per-layer tiling
    # and a per-layer finalize; this assumes a homogeneous list like the tests.

    n_layers = len(feature_activations)
    B, S, F = feature_activations[0].shape
    dtype = feature_activations[0].dtype
    itemsize = jnp.dtype(dtype).itemsize

    # ---- lane packing: fold k sequence steps into the feature (lane) dim ----
    k = 1
    if F < 128 and 128 % F == 0:
        k = 128 // F
        while k > 1 and S % k != 0:     # k is a power of two; walk its divisors
            k //= 2
    Sp, Fp = S // k, k * F
    acts = [jnp.reshape(a, (B, Sp, Fp)) for a in feature_activations]  # free view

    # ---- label-agreement weights (off-diag mask + 1/(B^2 - B) prefolded) ----
    labels = jnp.asarray(safety_labels).reshape(B).astype(jnp.float32)
    pos = (labels[:, None] == labels[None, :]).astype(jnp.float32)
    neg = 1.0 - pos
    offdiag = 1.0 - jnp.eye(B, dtype=jnp.float32)
    denom = float(B * B - B) if B > 1 else 1.0
    w_pos = pos * offdiag / denom
    w_neg = neg * offdiag / denom

    # ---- generation-aware tiling / VMEM budgets ----
    vmem_cap = _vmem_capacity_bytes()
    vmem_limit = (vmem_cap * 3) // 4            # ~96 MiB on 128 MiB parts, 48 MiB on v7x
    act_budget = vmem_limit // 2                # headroom for output block + pipeline
    tile_budget = max(act_budget // 2, 64 * 1024)   # per (double-buffered) act tile

    tS = _pick_seq_tile(B, Sp, Fp, itemsize, tile_budget)
    n_total = -(-Sp // tS)
    needs_mask = (Sp % tS) != 0
    n_par = 2 if (n_total >= 2 and n_total % 2 == 0) else 1   # v7x megacore split
    n_s = n_total // n_par

    tile_bytes = B * tS * Fp * itemsize
    deep_buffer = (tile_bytes < (2 << 20) and n_s >= 3
                   and 3 * tile_bytes <= act_budget)

    def act_index_map(p, s):
        return (0, p * n_s + s, 0)

    if deep_buffer:
        act_spec = pl.BlockSpec((B, tS, Fp), act_index_map,
                                pipeline_mode=pl.Buffered(3))
    else:
        act_spec = pl.BlockSpec((B, tS, Fp), act_index_map)

    pool_call = pl.pallas_call(
        functools.partial(_pool_kernel, needs_mask=needs_mask, seq_packed=Sp,
                          tile=tS, n_seq_steps=n_s),
        out_shape=jax.ShapeDtypeStruct((n_par, B, Fp), jnp.float32),
        grid_spec=pltpu.PrefetchScalarGridSpec(
            num_scalar_prefetch=0,
            grid=(n_par, n_s),
            in_specs=[act_spec],
            out_specs=pl.BlockSpec((None, B, Fp), lambda p, s: (p, 0, 0)),
        ),
        compiler_params=pltpu.CompilerParams(
            dimension_semantics=("parallel", "arbitrary"),
            vmem_limit_bytes=vmem_limit),
        cost_estimate=pl.CostEstimate(
            flops=int(B * S * F),
            transcendentals=0,
            bytes_accessed=int(B * S * F * itemsize + n_par * B * Fp * 4)),
    )

    # One HBM pass per layer; no full-size activation stack is materialized.
    partials = [pool_call(a) for a in acts]
    partial_pooled = jnp.stack(partials, axis=0)   # (L, n_par, B, Fp) -- tiny

    # ---- tiny finalize kernel: fold chunks/lanes, distances, hinge, mean ----
    finalize_args = [partial_pooled]
    if k > 1:
        # fold[g*F + f, f'] = (f == f') / S : unpack lane groups + mean in one matmul.
        fold = jnp.tile(jnp.eye(F, dtype=jnp.float32), (k, 1)) * (1.0 / float(S))
        finalize_args.append(fold)
    finalize_args += [w_pos, w_neg]

    out = pl.pallas_call(
        functools.partial(_finalize_kernel, n_layers=n_layers, pack=k,
                          margin=float(margin), inv_s=1.0 / float(S),
                          inv_l=1.0 / float(n_layers)),
        out_shape=jax.ShapeDtypeStruct((8, 128), jnp.float32),
    )(*finalize_args)

    return out[0, 0]


if __name__ == "__main__":
    key = jax.random.PRNGKey(0)
    k_acts, _ = jax.random.split(key)

    # small shapes consistent with forward(): list of [B, S, F] + labels [B]
    L, B, S, F = 3, 4, 8, 32
    acts = [jax.random.normal(k, (B, S, F), dtype=jnp.float32)
            for k in jax.random.split(k_acts, L)]
    labels = jnp.array([1.0, 0.0, 1.0, 0.0], dtype=jnp.float32)

    loss = contrastive_safety_loss(acts, labels, margin=1.0, temperature=0.1)
    loss = jax.block_until_ready(loss)

    # pure-JAX reference of the PyTorch forward (direct-difference cdist)
    def reference(acts, labels, margin):
        total = 0.0
        for a in acts:
            pooled = jnp.mean(a.astype(jnp.float32), axis=1)
            diff = pooled[:, None, :] - pooled[None, :, :]
            d = jnp.sqrt(jnp.sum(diff * diff, axis=-1))
            pos = (labels[:, None] == labels[None, :]).astype(jnp.float32)
            neg = 1.0 - pos
            lm = pos * d ** 2 + neg * jnp.maximum(margin - d, 0.0) ** 2
            nb = labels.shape[0]
            off = ~jnp.eye(nb, dtype=bool)
            total = total + jnp.sum(jnp.where(off, lm, 0.0)) / float(nb * nb - nb)
        return total / len(acts)

    ref = jax.block_until_ready(reference(acts, labels, 1.0))

    assert loss.shape == () and bool(jnp.isfinite(loss))
    assert abs(float(loss) - float(ref)) <= 1e-3 * max(1.0, abs(float(ref))), (loss, ref)
    print("KERNEL_OK")
</pallas_src>

<mosaic_0001>
module attributes {stable_mosaic.version = 11 : i64} {
  func.func @_pool_kernel(%arg0: i32, %arg1: i32, %arg2: memref<4x2x128xf32, #tpu.memory_space<vmem>>, %arg3: memref<1x4x128xf32, #tpu.memory_space<vmem>>) attributes {dimension_semantics = [#tpu.dimension_semantics<parallel>, #tpu.dimension_semantics<arbitrary>], iteration_bounds = array<i64: 1, 1>, scalar_prefetch = 0 : i64, scratch_operands = 0 : i64, tpu.core_type = #tpu.core_type<tc>, window_params = [{transform_indices = @transform_0, window_bounds = array<i64: 4, 2, 128>}, {transform_indices = @transform_1, window_bounds = array<i64: 1, 4, 128>}]} {
    %c0_i32 = arith.constant 0 : i32
    %0 = arith.cmpi eq, %arg1, %c0_i32 : i32
    %1 = arith.extui %0 : i1 to i32
    %c0_i32_0 = arith.constant 0 : i32
    %2 = arith.cmpi ne, %1, %c0_i32_0 : i32
    scf.if %2 {
      %cst_9 = arith.constant 0.000000e+00 : f32
      %11 = vector.broadcast %cst_9 : f32 to vector<4x128xf32>
      %c0_10 = arith.constant 0 : index
      %c0_11 = arith.constant 0 : index
      %c0_12 = arith.constant 0 : index
      %12 = vector.load %arg3[%c0_10, %c0_11, %c0_12] : memref<1x4x128xf32, #tpu.memory_space<vmem>>, vector<1x4x128xf32>
      %13 = vector.shape_cast %12 : vector<1x4x128xf32> to vector<4x128xf32>
      %14 = vector.shape_cast %11 : vector<4x128xf32> to vector<1x4x128xf32>
      tpu.vector_store %arg3[%c0_10, %c0_11, %c0_12], %14 {strides = array<i32>} : memref<1x4x128xf32, #tpu.memory_space<vmem>>, vector<1x4x128xf32>,
    } else {
    }
    %c0 = arith.constant 0 : index
    %c0_1 = arith.constant 0 : index
    %c0_2 = arith.constant 0 : index
    %3 = vector.load %arg2[%c0, %c0_1, %c0_2] : memref<4x2x128xf32, #tpu.memory_space<vmem>>, vector<4x2x128xf32>
    %c0_3 = arith.constant 0 : index
    %c0_4 = arith.constant 0 : index
    %c0_5 = arith.constant 0 : index
    %4 = vector.load %arg3[%c0_3, %c0_4, %c0_5] : memref<1x4x128xf32, #tpu.memory_space<vmem>>, vector<1x4x128xf32>
    %5 = vector.shape_cast %4 : vector<1x4x128xf32> to vector<4x128xf32>
    %cst = arith.constant dense<0.000000e+00> : vector<4x128xf32>
    %6 = vector.multi_reduction <add>, %3, %cst [1] : vector<4x2x128xf32> to vector<4x128xf32>
    %7 = arith.addf %5, %6 : vector<4x128xf32>
    %c0_6 = arith.constant 0 : index
    %c0_7 = arith.constant 0 : index
    %c0_8 = arith.constant 0 : index
    %8 = vector.load %arg3[%c0_6, %c0_7, %c0_8] : memref<1x4x128xf32, #tpu.memory_space<vmem>>, vector<1x4x128xf32>
    %9 = vector.shape_cast %8 : vector<1x4x128xf32> to vector<4x128xf32>
    %10 = vector.shape_cast %7 : vector<4x128xf32> to vector<1x4x128xf32>
    tpu.vector_store %arg3[%c0_6, %c0_7, %c0_8], %10 {strides = array<i32>} : memref<1x4x128xf32, #tpu.memory_space<vmem>>, vector<1x4x128xf32>,
    return
  }
  func.func @transform_0(%arg0: i32, %arg1: i32) -> (i32, i32, i32) {
    %c1_i32 = arith.constant 1 : i32
    %0 = arith.muli %arg0, %c1_i32 : i32
    %1 = arith.addi %0, %arg1 : i32
    %c0_i32 = arith.constant 0 : i32
    %c0_i32_0 = arith.constant 0 : i32
    %c0_i32_1 = arith.constant 0 : i32
    return %c0_i32, %1, %c0_i32_0 : i32, i32, i32
  }
  func.func @transform_1(%arg0: i32, %arg1: i32) -> (i32, i32, i32) {
    %c0_i32 = arith.constant 0 : i32
    %c0_i32_0 = arith.constant 0 : i32
    %c0_i32_1 = arith.constant 0 : i32
    return %arg0, %c0_i32, %c0_i32_0 : i32, i32, i32
  }
}

</mosaic_0001>

<llo_original>
// kernel: tpu_custom_call.1
$region0: #{tpu_custom_call.1}
  #allocation0 [shape = 'u32[]', space=smem, size = 0x4, offset = 0x4, fixed_abs, tag = 'smem constant byte address 0x4 - core index']
  #allocation1 [shape = 'u32[144,128]{1,0:T(1,128)}', space=vmem, size = 0x12000, scoped, tag = 'internal scratch']
  %s0 = inlined_call_operand.hbm [shape: f32[4,2,128], index: 0, kind: input, shape index: {}]
  %s1 = inlined_call_operand.hbm [shape: f32[1,4,128], index: 1, kind: output, shape index: {}]
  %s2 = sld [smem:[#allocation0]]
  $region22: #{tpu_custom_call.1} parent=0
    _
  %s4 = ssub.s32 1, %s2
  %s5 = scalar_select 0, %s4, %s2
  $region1: #{tpu_custom_call.1} parent=0
    #allocation2 [shape = 'u8[4096]{0}', space=vmem, size = 0x1000, scoped, tag = 'input window, operand 0, single buffered']
    #allocation3 [shape = 's32[1]{0}', space=sflag, size = 0x4, scoped, tag = 'scoped memory for tpu_custom_call.1']
    #allocation4 [shape = 's32[1]{0}', space=sflag, size = 0x4, scoped, tag = 'scoped memory for tpu_custom_call.1']
    #allocation5 [shape = 'u8[2048]{0}', space=vmem, size = 0x800, scoped, tag = 'output window, operand 0, single buffered']
    %6 = vsyncpa [#allocation3], 0
    %7 = vsyncpa [#allocation4], 0
    // Predicated region
    $region2: #{tpu_custom_call.1} parent=1 // pred_check
      _
    $region3: #{tpu_custom_call.1} parent=1 // pred_check_branch
      %9 = sbr.rel (0) target = $region5
    $region4: #{tpu_custom_call.1} parent=1 // pred_region
      %s10 = sadd.s32 0, 0
      %s12 = ssub.s32 128, 128
      %13 = vsyncadd [#allocation3], %s12
      %s14 = smul.addr %s10, 32
      %s15 = scalar_lea.hbm %s0, %s14
      %s16 = sshll.u32 [#allocation2], 4
      %s17 = int_to_ptr.vmem [resolvable:$true] %s16
      %22 = dma.hbm_to_vmem [thread:$0]  %s15, 128, %s17, [#allocation3], 32, 32, 2
    $region5: #{tpu_custom_call.1} parent=1 // pred_fallthru
      _
    // Predicated region
    $region6: #{tpu_custom_call.1} parent=1 // pred_check
      _
    $region7: #{tpu_custom_call.1} parent=1 // pred_check_branch
      %24 = sbr.rel (0) target = $region9
    $region8: #{tpu_custom_call.1} parent=1 // pred_region
      %25 = dma.done [#allocation3], 128
    $region9: #{tpu_custom_call.1} parent=1 // pred_fallthru
      _
    %s26 = sadd.s32 0, 0
    %p27 = scmp.eq.s32.totalorder 0, 0
    // Predicated region
    $region10: #{tpu_custom_call.1} parent=1 // pred_check
      %p28 = pneg %p27
    $region11: #{tpu_custom_call.1} parent=1 // pred_check_branch
      %30 = sbr.rel (%p28) target = $region13
    $region12: #{tpu_custom_call.1} parent=1 // pred_region
      %31 = vst [vmem:[#allocation5] sm:$0xf] 0.0
    $region13: #{tpu_custom_call.1} parent=1 // pred_fallthru
      _
    %v32 = vld [vmem:[#allocation2] sm:$0x3]
    %v33 = vld [vmem:[#allocation2 + $0x2] sm:$0x3]
    %v34 = vld [vmem:[#allocation2 + $0x4] sm:$0x3]
    %v35 = vld [vmem:[#allocation2 + $0x6] sm:$0x3]
    %v36 = vld [vmem:[#allocation5] sm:$0xf]
    %vm37 = vcmask 1041408
    %v38 = vsel %vm37, %v32, 0.0
    %v39 = vrot.slane %v38, 4
    %v40 = vadd.f32 %v38, %v39
    %v41 = vrot.slane %v40, 2
    %v42 = vadd.f32 %v40, %v41
    %v43 = vrot.slane %v42, 1
    %v44 = vadd.f32 %v42, %v43
    %v45 = vsel %vm37, %v33, 0.0
    %v46 = vrot.slane %v45, 4
    %v47 = vadd.f32 %v45, %v46
    %v48 = vrot.slane %v47, 2
    %v49 = vadd.f32 %v47, %v48
    %v50 = vrot.slane %v49, 1
    %v51 = vadd.f32 %v49, %v50
    %v52 = vsel %vm37, %v34, 0.0
    %v53 = vrot.slane %v52, 4
    %v54 = vadd.f32 %v52, %v53
    %v55 = vrot.slane %v54, 2
    %v56 = vadd.f32 %v54, %v55
    %v57 = vrot.slane %v56, 1
    %v58 = vadd.f32 %v56, %v57
    %v59 = vsel %vm37, %v35, 0.0
    %v60 = vrot.slane %v59, 4
    %v61 = vadd.f32 %v59, %v60
    %v62 = vrot.slane %v61, 2
    %v63 = vadd.f32 %v61, %v62
    %v64 = vrot.slane %v63, 1
    %v65 = vadd.f32 %v63, %v64
    %vm70 = vcmask 1041409
    %v71 = vsel %vm70, %v51, %v44
    %vm72 = vcmask 1042434
    %v73 = vsel %vm72, %v58, %v71
    %vm74 = vcmask 1043459
    %v75 = vsel %vm74, %v65, %v73
    %v77 = vadd.f32 %v36, %v75
    %78 = vst [vmem:[#allocation5] sm:$0xf] %v77
    // Predicated region
    $region14: #{tpu_custom_call.1} parent=1 // pred_check
      _
    $region15: #{tpu_custom_call.1} parent=1 // pred_check_branch
      %80 = sbr.rel (0) target = $region17
    $region16: #{tpu_custom_call.1} parent=1 // pred_region
      %s82 = ssub.s32 64, 64
      %83 = vsyncadd [#allocation4], %s82
      %s85 = sshll.u32 [#allocation5], 4
      %s86 = int_to_ptr.vmem [resolvable:$true] %s85
      %88 = dma.vmem_to_hbm [thread:$0]  %s86, 64, %s1, [#allocation4]
    $region17: #{tpu_custom_call.1} parent=1 // pred_fallthru
      _
    // Predicated region
    $region18: #{tpu_custom_call.1} parent=1 // pred_check
      _
    $region19: #{tpu_custom_call.1} parent=1 // pred_check_branch
      %90 = sbr.rel (0) target = $region21
    $region20: #{tpu_custom_call.1} parent=1 // pred_region
      %91 = dma.done [#allocation4], 64
    $region21: #{tpu_custom_call.1} parent=1 // pred_fallthru
      _
    %92 = vsyncpa [#allocation3], 1
    %93 = vsyncpa [#allocation4], 1

</llo_original>
